<compile_context>
chip_gen: v5e
topology: v5e:2x2
jax: 0.10.0
libtpu: 0.0.40
codegen_flags: <defaults>
</compile_context>

<pallas_src>
import math

import jax
import jax.numpy as jnp
from jax.experimental import pallas as pl
from jax.experimental.pallas import tpu as pltpu


_TARGET_BLOCK_BYTES = 3 << 20  # ~3 MiB per x block (2-4 MiB sweet spot)


def _psgu_kernel(p_ref, x_ref, o_ref):
    # p_ref: (1, td) — resident across row steps (constant row index), implicit
    # sublane broadcast in the multiply.  x_ref / o_ref: (tm, td).
    # Gate is computed in f32 for accuracy; the kernel is HBM-bound so the
    # upcast is free (optional bf16 compute on v6e/v7x not needed).
    x = x_ref[...].astype(jnp.float32)
    p = p_ref[...].astype(jnp.float32)
    # sigmoid(x) = 0.5 * (1 + tanh(0.5 * x)) -> 2 tanh instead of exp+recip+tanh
    sig = 0.5 * (1.0 + jnp.tanh(0.5 * x))
    gate = jnp.tanh(p * sig)
    o_ref[...] = (x * gate).astype(o_ref.dtype)


def _sublane_multiple(itemsize: int) -> int:
    # Native sublane tile: (8,128) f32, (16,128) bf16, (32,128) int8/fp8.
    return {4: 8, 2: 16, 1: 32}.get(itemsize, 8)


def _round_down(x: int, m: int) -> int:
    return max(m, (x // m) * m)


def _vmem_budgets() -> tuple[int, int]:
    """(double-buffered working-set budget for x/out blocks, vmem_limit_bytes)."""
    cap = 64 << 20
    try:
        cap = int(getattr(pltpu.get_tpu_info(), "vmem_capacity_bytes", cap))
    except Exception:
        pass
    if cap >= (96 << 20):          # v5e / v6e: 128 MiB physical VMEM
        return 24 << 20, 64 << 20
    return 20 << 20, 48 << 20      # v7x: 64 MiB physical (32 MiB scoped default)


def _pick_tiles(Mr: int, Dp: int, itemsize: int, working_budget: int) -> tuple[int, int]:
    sub = _sublane_multiple(itemsize)

    # Column tiling only for very wide rows, where even a minimum-height
    # (sub-row) full-width block would blow past the per-block byte target.
    td = Dp
    if sub * Dp * itemsize > _TARGET_BLOCK_BYTES:
        td = _round_down(_TARGET_BLOCK_BYTES // (sub * itemsize), 128)
        td = min(td, Dp)

    # Row tile from the per-block byte target ...
    tm = _TARGET_BLOCK_BYTES // (td * itemsize)
    # ... capped by the double-buffered (2x in + 2x out) working-set budget ...
    tm = min(tm, working_budget // (4 * td * itemsize))
    tm = _round_down(tm, sub)
    # ... and clamped so the grid keeps >= ~8 steps (pipeline overlap + v7x
    # megacore sharding) whenever the tensor is big enough to allow it.
    if Mr >= 8 * sub and pl.cdiv(Dp, td) * pl.cdiv(Mr, tm) < 8:
        tm = _round_down(pl.cdiv(Mr, 8), sub)
    tm = min(tm, Mr)
    return tm, td


def psgu(x: jax.Array, params: jax.Array, *, tm: int | None = None,
         td: int | None = None) -> jax.Array:
    """x: (..., D), params: (D,). Returns same shape/dtype as x."""
    orig_shape = x.shape
    D = orig_shape[-1]
    assert params.shape == (D,)

    M = 1
    for s in orig_shape[:-1]:
        M *= s

    x2 = x.reshape(M, D)
    p2 = params.reshape(1, D)
    Dp, Mr, pad_rows = D, M, 0

    # Lane-dense packing when D is not a multiple of 128: pack g rows per
    # lane-row so the last dim is 128-aligned; pad the row count if needed so
    # the output layout never falls back to lane-sparse / masked stores.
    if D % 128 != 0:
        g = 128 // math.gcd(D, 128)          # g > 1 since D % 128 != 0
        pad_rows = (-M) % g
        if pad_rows:
            x2 = jnp.pad(x2, ((0, pad_rows), (0, 0)))
        Dp = g * D
        Mr = (M + pad_rows) // g
        x2 = x2.reshape(Mr, Dp)
        p2 = jnp.tile(params, g).reshape(1, Dp)

    itemsize = jnp.dtype(x.dtype).itemsize
    working_budget, vmem_limit = _vmem_budgets()
    auto_tm, auto_td = _pick_tiles(Mr, Dp, itemsize, working_budget)
    tm = auto_tm if tm is None else min(tm, Mr)
    td = auto_td if td is None else min(td, Dp)

    out = pl.pallas_call(
        _psgu_kernel,
        out_shape=jax.ShapeDtypeStruct((Mr, Dp), x.dtype),
        grid_spec=pltpu.PrefetchScalarGridSpec(
            num_scalar_prefetch=0,
            grid=(pl.cdiv(Mr, tm), pl.cdiv(Dp, td)),
            in_specs=[
                pl.BlockSpec((1, td), lambda i, j: (0, j)),    # params (row-resident)
                pl.BlockSpec((tm, td), lambda i, j: (i, j)),   # x
            ],
            out_specs=pl.BlockSpec((tm, td), lambda i, j: (i, j)),
        ),
        compiler_params=pltpu.CompilerParams(
            dimension_semantics=("parallel", "parallel"),  # rows shard across TCs on v7x
            vmem_limit_bytes=vmem_limit,
        ),
    )(p2, x2)

    out = out.reshape(-1, D)
    if pad_rows:
        out = out[:M]
    return out.reshape(orig_shape)


def _ref_psgu(x, params):
    xf = x.astype(jnp.float32)
    pf = params.astype(jnp.float32)
    return (xf * jnp.tanh(pf * jax.nn.sigmoid(xf))).astype(x.dtype)


if __name__ == "__main__":
    key = jax.random.PRNGKey(0)

    # Primary test: shapes consistent with the module (batch, seq, dim_sz).
    B, S, D = 2, 8, 32
    x = jax.random.normal(key, (B, S, D), dtype=jnp.float32)
    params = jnp.full((D,), 0.5, dtype=jnp.float32)   # torch.ones(dim_sz)*0.5

    y = jax.block_until_ready(psgu(x, params))
    ref = _ref_psgu(x, params)
    assert y.shape == x.shape and y.dtype == x.dtype
    assert jnp.allclose(y, ref, atol=1e-5, rtol=1e-5), "mismatch vs reference"

    # D multiple of 128, multiple grid steps with a partial last row block
    # (forced small tm) — exercises the masked-boundary path.
    x2 = jax.random.normal(jax.random.PRNGKey(1), (40, 256), dtype=jnp.float32)
    p2 = jnp.full((256,), 0.5, dtype=jnp.float32)
    y2 = jax.block_until_ready(psgu(x2, p2, tm=16))
    assert jnp.allclose(y2, _ref_psgu(x2, p2), atol=1e-5, rtol=1e-5), \
        "mismatch vs reference (partial block)"

    # D % 128 != 0 with M not divisible by the packing factor — exercises the
    # row-padding + output-slice path (g=4, pad 3 rows).
    x3 = jax.random.normal(jax.random.PRNGKey(2), (5, 32), dtype=jnp.float32)
    p3 = jnp.full((32,), 0.5, dtype=jnp.float32)
    y3 = jax.block_until_ready(psgu(x3, p3))
    assert y3.shape == x3.shape
    assert jnp.allclose(y3, _ref_psgu(x3, p3), atol=1e-5, rtol=1e-5), \
        "mismatch vs reference (padded packing)"

    # bf16 path: row tile rounds to the native (16,128) tile; f32 gate compute.
    x4 = jax.random.normal(jax.random.PRNGKey(3), (16, 128),
                           dtype=jnp.float32).astype(jnp.bfloat16)
    p4 = jnp.full((128,), 0.5, dtype=jnp.bfloat16)
    y4 = jax.block_until_ready(psgu(x4, p4))
    assert y4.dtype == jnp.bfloat16
    assert jnp.allclose(y4.astype(jnp.float32),
                        _ref_psgu(x4, p4).astype(jnp.float32),
                        atol=2e-2, rtol=2e-2), "mismatch vs reference (bf16)"

    print("KERNEL_OK")
</pallas_src>

<mosaic_0001>
module attributes {stable_mosaic.version = 11 : i64} {
  func.func @_psgu_kernel(%arg0: i32, %arg1: i32, %arg2: memref<1x128xf32, #tpu.memory_space<vmem>>, %arg3: memref<4x128xf32, #tpu.memory_space<vmem>>, %arg4: memref<4x128xf32, #tpu.memory_space<vmem>>) attributes {dimension_semantics = [#tpu.dimension_semantics<parallel>, #tpu.dimension_semantics<parallel>], iteration_bounds = array<i64: 1, 1>, scalar_prefetch = 0 : i64, scratch_operands = 0 : i64, tpu.core_type = #tpu.core_type<tc>, window_params = [{transform_indices = @transform_0, window_bounds = array<i64: 1, 128>}, {transform_indices = @transform_1, window_bounds = array<i64: 4, 128>}, {transform_indices = @transform_2, window_bounds = array<i64: 4, 128>}]} {
    %c0 = arith.constant 0 : index
    %c0_0 = arith.constant 0 : index
    %0 = vector.load %arg3[%c0, %c0_0] : memref<4x128xf32, #tpu.memory_space<vmem>>, vector<4x128xf32>
    %c0_1 = arith.constant 0 : index
    %c0_2 = arith.constant 0 : index
    %1 = vector.load %arg2[%c0_1, %c0_2] : memref<1x128xf32, #tpu.memory_space<vmem>>, vector<1x128xf32>
    %cst = arith.constant 5.000000e-01 : f32
    %2 = vector.broadcast %cst : f32 to vector<4x128xf32>
    %3 = arith.mulf %2, %0 : vector<4x128xf32>
    %4 = math.tanh %3 : vector<4x128xf32>
    %cst_3 = arith.constant 1.000000e+00 : f32
    %5 = vector.broadcast %cst_3 : f32 to vector<4x128xf32>
    %6 = arith.addf %5, %4 : vector<4x128xf32>
    %cst_4 = arith.constant 5.000000e-01 : f32
    %7 = vector.broadcast %cst_4 : f32 to vector<4x128xf32>
    %8 = arith.mulf %7, %6 : vector<4x128xf32>
    %9 = vector.broadcast %1 : vector<1x128xf32> to vector<4x128xf32>
    %10 = arith.mulf %9, %8 : vector<4x128xf32>
    %11 = math.tanh %10 : vector<4x128xf32>
    %12 = arith.mulf %0, %11 : vector<4x128xf32>
    %c0_5 = arith.constant 0 : index
    %c0_6 = arith.constant 0 : index
    %13 = vector.load %arg4[%c0_5, %c0_6] : memref<4x128xf32, #tpu.memory_space<vmem>>, vector<4x128xf32>
    tpu.vector_store %arg4[%c0_5, %c0_6], %12 {strides = array<i32>} : memref<4x128xf32, #tpu.memory_space<vmem>>, vector<4x128xf32>,
    return
  }
  func.func @transform_0(%arg0: i32, %arg1: i32) -> (i32, i32) {
    %c0_i32 = arith.constant 0 : i32
    %c0_i32_0 = arith.constant 0 : i32
    return %c0_i32, %arg1 : i32, i32
  }
  func.func @transform_1(%arg0: i32, %arg1: i32) -> (i32, i32) {
    %c0_i32 = arith.constant 0 : i32
    return %arg0, %arg1 : i32, i32
  }
  func.func @transform_2(%arg0: i32, %arg1: i32) -> (i32, i32) {
    %c0_i32 = arith.constant 0 : i32
    return %arg0, %arg1 : i32, i32
  }
}

</mosaic_0001>

<llo_original>
// kernel: tpu_custom_call.1
$region0: #{tpu_custom_call.1}
  #allocation0 [shape = 'u32[]', space=smem, size = 0x4, offset = 0x4, fixed_abs, tag = 'smem constant byte address 0x4 - core index']
  #allocation1 [shape = 'u32[72,128]{1,0:T(1,128)}', space=vmem, size = 0x9000, scoped, tag = 'internal scratch']
  %s0 = inlined_call_operand.hbm [shape: f32[1,128], index: 0, kind: input, shape index: {}]
  %s1 = inlined_call_operand.hbm [shape: f32[4,128], index: 1, kind: input, shape index: {}]
  %s2 = inlined_call_operand.hbm [shape: f32[4,128], index: 2, kind: output, shape index: {}]
  %s3 = sld [smem:[#allocation0]]
  $region26: #{tpu_custom_call.1} parent=0
    _
  %s5 = ssub.s32 1, %s3
  %s6 = scalar_select 0, %s5, %s3
  $region1: #{tpu_custom_call.1} parent=0
    #allocation2 [shape = 'u8[512]{0}', space=vmem, size = 0x400, scoped, tag = 'input window, operand 0, single buffered']
    #allocation3 [shape = 's32[1]{0}', space=sflag, size = 0x4, scoped, tag = 'scoped memory for tpu_custom_call.1']
    #allocation4 [shape = 's32[1]{0}', space=sflag, size = 0x4, scoped, tag = 'scoped memory for tpu_custom_call.1']
    #allocation5 [shape = 'u8[2048]{0}', space=vmem, size = 0x800, scoped, tag = 'input window, operand 1, single buffered']
    #allocation6 [shape = 's32[1]{0}', space=sflag, size = 0x4, scoped, tag = 'scoped memory for tpu_custom_call.1']
    #allocation7 [shape = 'u8[2048]{0}', space=vmem, size = 0x800, scoped, tag = 'output window, operand 0, single buffered']
    %7 = vsyncpa [#allocation3], 0
    %8 = vsyncpa [#allocation6], 0
    %9 = vsyncpa [#allocation4], 0
    // Predicated region
    $region2: #{tpu_custom_call.1} parent=1 // pred_check
      _
    $region3: #{tpu_custom_call.1} parent=1 // pred_check_branch
      %11 = sbr.rel (0) target = $region5
    $region4: #{tpu_custom_call.1} parent=1 // pred_region
      %13 = vsyncadd [#allocation3], 0
      %s15 = sshll.u32 %s0, 4
      %s16 = int_to_ptr.hbm [resolvable:$true] %s15
      %s17 = sshll.u32 [#allocation2], 4
      %s18 = int_to_ptr.vmem [resolvable:$true] %s17
      %20 = dma.hbm_to_vmem [thread:$0]  %s16, 16, %s18, [#allocation3]
    $region5: #{tpu_custom_call.1} parent=1 // pred_fallthru
      _
    // Predicated region
    $region6: #{tpu_custom_call.1} parent=1 // pred_check
      _
    $region7: #{tpu_custom_call.1} parent=1 // pred_check_branch
      %22 = sbr.rel (0) target = $region9
    $region8: #{tpu_custom_call.1} parent=1 // pred_region
      %24 = vsyncadd [#allocation6], 0
      %s26 = sshll.u32 %s1, 4
      %s27 = int_to_ptr.hbm [resolvable:$true] %s26
      %s28 = sshll.u32 [#allocation5], 4
      %s29 = int_to_ptr.vmem [resolvable:$true] %s28
      %31 = dma.hbm_to_vmem [thread:$0]  %s27, 64, %s29, [#allocation6]
    $region9: #{tpu_custom_call.1} parent=1 // pred_fallthru
      _
    // Predicated region
    $region10: #{tpu_custom_call.1} parent=1 // pred_check
      _
    $region11: #{tpu_custom_call.1} parent=1 // pred_check_branch
      %33 = sbr.rel (0) target = $region13
    $region12: #{tpu_custom_call.1} parent=1 // pred_region
      %35 = dma.done [#allocation3], 16
    $region13: #{tpu_custom_call.1} parent=1 // pred_fallthru
      _
    // Predicated region
    $region14: #{tpu_custom_call.1} parent=1 // pred_check
      _
    $region15: #{tpu_custom_call.1} parent=1 // pred_check_branch
      %37 = sbr.rel (0) target = $region17
    $region16: #{tpu_custom_call.1} parent=1 // pred_region
      %39 = dma.done [#allocation6], 64
    $region17: #{tpu_custom_call.1} parent=1 // pred_fallthru
      _
    %v40 = vld [vmem:[#allocation5] sm:$0xf]
    %v41 = vld [vmem:[#allocation2] sm:$0x1]
    %v42 = vmul.f32 %v40, 0.5
    %v43 = vtanh.pop %v42
    %v44 = vadd.f32 %v43, 1.0
    %v45 = vmul.f32 %v44, 0.5
    %v47 = vperm.slane %v41, 0
    %v49 = vmul.f32 %v47, %v45
    %v50 = vtanh.pop %v49
    %v51 = vmul.f32 %v40, %v50
    %52 = vst [vmem:[#allocation7] sm:$0xf] %v51
    // Predicated region
    $region18: #{tpu_custom_call.1} parent=1 // pred_check
      _
    $region19: #{tpu_custom_call.1} parent=1 // pred_check_branch
      %54 = sbr.rel (0) target = $region21
    $region20: #{tpu_custom_call.1} parent=1 // pred_region
      %56 = vsyncadd [#allocation4], 0
      %s58 = sshll.u32 [#allocation7], 4
      %s59 = int_to_ptr.vmem [resolvable:$true] %s58
      %s60 = sshll.u32 %s2, 4
      %s61 = int_to_ptr.hbm [resolvable:$true] %s60
      %63 = dma.vmem_to_hbm [thread:$0]  %s59, 64, %s61, [#allocation4]
    $region21: #{tpu_custom_call.1} parent=1 // pred_fallthru
      _
    // Predicated region
    $region22: #{tpu_custom_call.1} parent=1 // pred_check
      _
    $region23: #{tpu_custom_call.1} parent=1 // pred_check_branch
      %65 = sbr.rel (0) target = $region25
    $region24: #{tpu_custom_call.1} parent=1 // pred_region
      %67 = dma.done [#allocation4], 64
    $region25: #{tpu_custom_call.1} parent=1 // pred_fallthru
      _
    %68 = vsyncpa [#allocation3], 1
    %69 = vsyncpa [#allocation6], 1
    %70 = vsyncpa [#allocation4], 1

</llo_original>
